<compile_context>
chip_gen: v7x
topology: tpu7x:2x2x1
jax: 0.10.0
libtpu: 0.0.40
codegen_flags: <defaults>
</compile_context>

<pallas_src>
import functools

import jax
import jax.numpy as jnp
from jax.experimental import pallas as pl
from jax.experimental.pallas import tpu as pltpu

NEG_SLOPE = 0.01  # nn.LeakyReLU default


def _leaky_relu(x):
    return jnp.where(x > 0, x, NEG_SLOPE * x)


def _classifier_kernel(x_ref, w1_ref, b1_ref, pw_ref, w2_ref, bias_ref, out_ref,
                       *, node_sz):
    """One grid step == one chunk of graphs (g_chunk * node_sz rows of x)."""
    # First Linear + LeakyReLU for the whole chunk.  bf16 operands hit the native
    # MXU path on v5e/v6e/v7x; accumulation stays f32 via preferred_element_type.
    h1 = jnp.dot(x_ref[...], w1_ref[...], preferred_element_type=jnp.float32)
    h1 = _leaky_relu(h1 + b1_ref[...])                                # [R, F] f32

    # Learned pooling folded ahead of W2 (exact: both ops are linear).
    # Per-node weight multiply on the VPU + sublane-group reduce (XLU); no MXU
    # push/pop per graph.  Fast path when node_sz % 8 == 0 (sublane aligned).
    rows, feat = h1.shape
    g_chunk = rows // node_sz
    weighted = h1.reshape(g_chunk, node_sz, feat) * pw_ref[...][None, :, :]
    pooled = weighted.sum(axis=1)                                     # [G, F] f32

    # Second Linear on pooled features (node_sz x fewer FLOPs) with the fused bias
    # (sum(pool_w) * b2 + pool_b), then the pooling LeakyReLU.  Lane-dense store.
    y = jnp.dot(pooled.astype(w2_ref.dtype), w2_ref[...],
                preferred_element_type=jnp.float32) + bias_ref[...]   # [G, Cpad]
    out_ref[...] = _leaky_relu(y).astype(out_ref.dtype)


def _vmem_capacity_bytes():
    try:
        return int(pltpu.get_tpu_info().vmem_capacity_bytes)
    except Exception:
        return 64 << 20  # v7x-safe fallback


def _max_rows_for_budget(feat_dim, nclass_pad, x_bytes, w_bytes, budget):
    """Largest row chunk whose per-step VMEM working set fits `budget` bytes."""
    fixed = 2 * feat_dim * feat_dim * w_bytes        # W1 (conservatively 2 buffers)
    fixed += 2 * feat_dim * nclass_pad * w_bytes     # W2 (lane padded)
    fixed += 4 * (feat_dim + nclass_pad) * 4         # b1 / fused bias (tiny)
    # per row: x (double buffered) + f32 h1 + f32 weighted temporary
    per_row = 2 * feat_dim * x_bytes + 2 * feat_dim * 4
    avail = budget - fixed
    if avail <= per_row * 8:
        return 8
    return int(avail // per_row)


def _pick_g_chunk(num_graphs, node_sz, max_rows):
    """Graphs per grid step.  Always divides num_graphs (so x is never padded in the
    wrapper).  Prefers >= 2 grid steps (v7x dual-TensorCore) when the chunks stay
    big enough to be worth splitting."""
    divisors = [d for d in range(1, num_graphs + 1) if num_graphs % d == 0]
    fit = [d for d in divisors if d * node_sz <= max_rows]
    if not fit:
        # TODO(synk): feat-axis tiling for a single graph whose rows overflow VMEM.
        return 1
    multi = [d for d in fit if d <= num_graphs // 2]
    if multi and max(multi) * node_sz >= 64:
        return max(multi)
    return max(fit)


def classifier_forward(x, w1, b1, w2, b2, pool_w, pool_b, *, num_graphs, node_sz,
                       use_bf16=True):
    feat_dim = x.shape[-1]
    nclass = w2.shape[-1]
    nclass_pad = max(128, pl.cdiv(nclass, 128) * 128)   # lane-dense output block

    op_dtype = jnp.bfloat16 if use_bf16 else x.dtype
    op_bytes = jnp.dtype(op_dtype).itemsize

    vmem_cap = _vmem_capacity_bytes()
    budget = vmem_cap // 2            # headroom for Mosaic scratch + pipeline buffers
    max_rows = min(2048, _max_rows_for_budget(feat_dim, nclass_pad,
                                              op_bytes, op_bytes, budget))
    g_chunk = _pick_g_chunk(num_graphs, node_sz, max_rows)
    num_steps = num_graphs // g_chunk
    rows = g_chunk * node_sz

    # Operand dtype: bf16 is the native MXU format; accumulation stays f32 in-kernel.
    x = x.astype(op_dtype)
    w1 = w1.astype(op_dtype)

    # 3-D "one chunk per leading index" view: trailing block dims always equal the
    # full array dims, so no (8,128) divisibility issues and no jnp.pad pass over x.
    x3 = x.reshape(num_steps, rows, feat_dim)

    # Fuse the pooling bias into the second Linear's bias (exact fold):
    #   out = pooled_h1 @ W2 + sum(pool_w) * b2 + pool_b
    fused_bias = (jnp.sum(pool_w) * b2 + pool_b.reshape(())).astype(jnp.float32)
    bias_p = jnp.pad(fused_bias, (0, nclass_pad - nclass)).reshape(1, nclass_pad)
    w2_p = jnp.pad(w2, ((0, 0), (0, nclass_pad - nclass))).astype(op_dtype)

    b1_2d = b1.reshape(1, feat_dim).astype(jnp.float32)
    # Per-node pooling weights, broadcast across feature lanes (tiny, grid-invariant).
    pw_bcast = jnp.broadcast_to(pool_w.reshape(node_sz, 1).astype(jnp.float32),
                                (node_sz, feat_dim))

    grid_spec = pltpu.PrefetchScalarGridSpec(
        num_scalar_prefetch=0,
        grid=(num_steps,),
        in_specs=[
            pl.BlockSpec((None, rows, feat_dim), lambda g: (g, 0, 0)),   # x chunk
            pl.BlockSpec((feat_dim, feat_dim), lambda g: (0, 0)),        # W1 (invariant)
            pl.BlockSpec((1, feat_dim), lambda g: (0, 0)),               # b1
            pl.BlockSpec((node_sz, feat_dim), lambda g: (0, 0)),         # pool weights
            pl.BlockSpec((feat_dim, nclass_pad), lambda g: (0, 0)),      # W2 (lane pad)
            pl.BlockSpec((1, nclass_pad), lambda g: (0, 0)),             # fused bias
        ],
        # Each grid step owns its output block -> lane-dense unmasked stores and a
        # safely-parallel grid axis (shards across v7x's two TensorCores).
        out_specs=pl.BlockSpec((None, g_chunk, nclass_pad), lambda g: (g, 0, 0)),
    )

    out = pl.pallas_call(
        functools.partial(_classifier_kernel, node_sz=node_sz),
        out_shape=jax.ShapeDtypeStruct((num_steps, g_chunk, nclass_pad), jnp.float32),
        grid_spec=grid_spec,
        compiler_params=pltpu.CompilerParams(
            dimension_semantics=("parallel",),
            vmem_limit_bytes=int(vmem_cap * 0.9),
        ),
    )(x3, w1, b1_2d, pw_bcast, w2_p, bias_p)

    return out.reshape(num_graphs, nclass_pad)[:, :nclass]


def classifier_reference(x, w1, b1, w2, b2, pool_w, pool_b, *, num_graphs, node_sz):
    h = _leaky_relu(x @ w1 + b1)
    h = h @ w2 + b2                                            # [B*node_sz, nclass]
    h = h.reshape(num_graphs, node_sz, -1).transpose(0, 2, 1)  # [B, nclass, node_sz]
    return _leaky_relu(jnp.einsum("bcn,n->bc", h, pool_w) + pool_b)


if __name__ == "__main__":
    # Small shapes consistent with the module.
    num_graphs = 2      # batch.max() + 1
    node_sz = 8         # nodes per graph
    feat_dim = 32
    nclass = 4

    key = jax.random.PRNGKey(0)
    kx, k1, k2, k3, k4, k5, k6 = jax.random.split(key, 7)

    # Node features, flattened over graphs: [B*node_sz, feat_dim]
    x = jax.random.normal(kx, (num_graphs * node_sz, feat_dim), dtype=jnp.float32)

    # Deterministic synthetic parameters (Linear weights stored as [in, out]).
    w1 = jax.random.normal(k1, (feat_dim, feat_dim), dtype=jnp.float32) * 0.1
    b1 = jax.random.normal(k2, (feat_dim,), dtype=jnp.float32) * 0.1
    w2 = jax.random.normal(k3, (feat_dim, nclass), dtype=jnp.float32) * 0.1
    b2 = jax.random.normal(k4, (nclass,), dtype=jnp.float32) * 0.1
    pool_w = jax.random.normal(k5, (node_sz,), dtype=jnp.float32) * 0.1
    pool_b = jax.random.normal(k6, (1,), dtype=jnp.float32) * 0.1

    # TODO(synk): GNN branch (MessagePassing net) and scatter_mean/max aggr paths
    # are not exercised by this MLP + 'learn' configuration.

    ref = classifier_reference(x, w1, b1, w2, b2, pool_w, pool_b,
                               num_graphs=num_graphs, node_sz=node_sz)

    # f32 operands: the pooling fold is algebraically exact -> tight tolerance.
    out_f32 = classifier_forward(x, w1, b1, w2, b2, pool_w, pool_b,
                                 num_graphs=num_graphs, node_sz=node_sz,
                                 use_bf16=False)
    out_f32 = jax.block_until_ready(out_f32)
    assert out_f32.shape == (num_graphs, nclass)
    assert jnp.allclose(out_f32, ref, atol=1e-4, rtol=1e-4)

    # Default path: bf16 MXU operands, f32 accumulation -> bf16-level tolerance.
    out_bf16 = classifier_forward(x, w1, b1, w2, b2, pool_w, pool_b,
                                  num_graphs=num_graphs, node_sz=node_sz)
    out_bf16 = jax.block_until_ready(out_bf16)
    assert out_bf16.shape == (num_graphs, nclass)
    assert jnp.allclose(out_bf16, ref, atol=2e-2, rtol=2e-2)

    # Slightly larger batch: exercises a multi-step "parallel" grid (>=2 steps).
    ng2 = 32
    x2 = jax.random.normal(kx, (ng2 * node_sz, feat_dim), dtype=jnp.float32)
    ref2 = classifier_reference(x2, w1, b1, w2, b2, pool_w, pool_b,
                                num_graphs=ng2, node_sz=node_sz)
    out2 = classifier_forward(x2, w1, b1, w2, b2, pool_w, pool_b,
                              num_graphs=ng2, node_sz=node_sz, use_bf16=False)
    out2 = jax.block_until_ready(out2)
    assert out2.shape == (ng2, nclass)
    assert jnp.allclose(out2, ref2, atol=1e-4, rtol=1e-4)

    print("KERNEL_OK")
</pallas_src>

<mosaic_0001>
module attributes {stable_mosaic.version = 11 : i64} {
  func.func @_classifier_kernel(%arg0: i32, %arg1: memref<1x16x32xf32, #tpu.memory_space<vmem>>, %arg2: memref<32x32xf32, #tpu.memory_space<vmem>>, %arg3: memref<1x32xf32, #tpu.memory_space<vmem>>, %arg4: memref<8x32xf32, #tpu.memory_space<vmem>>, %arg5: memref<32x128xf32, #tpu.memory_space<vmem>>, %arg6: memref<1x128xf32, #tpu.memory_space<vmem>>, %arg7: memref<1x2x128xf32, #tpu.memory_space<vmem>>) attributes {dimension_semantics = [#tpu.dimension_semantics<parallel>], iteration_bounds = array<i64: 1>, scalar_prefetch = 0 : i64, scratch_operands = 0 : i64, tpu.core_type = #tpu.core_type<tc>, window_params = [{transform_indices = @transform_0, window_bounds = array<i64: 1, 16, 32>}, {pipeline_mode = #tpu.pipeline_mode<synchronous>, transform_indices = @transform_1, window_bounds = array<i64: 32, 32>}, {pipeline_mode = #tpu.pipeline_mode<synchronous>, transform_indices = @transform_2, window_bounds = array<i64: 1, 32>}, {pipeline_mode = #tpu.pipeline_mode<synchronous>, transform_indices = @transform_3, window_bounds = array<i64: 8, 32>}, {pipeline_mode = #tpu.pipeline_mode<synchronous>, transform_indices = @transform_4, window_bounds = array<i64: 32, 128>}, {pipeline_mode = #tpu.pipeline_mode<synchronous>, transform_indices = @transform_5, window_bounds = array<i64: 1, 128>}, {transform_indices = @transform_6, window_bounds = array<i64: 1, 2, 128>}]} {
    %c0 = arith.constant 0 : index
    %c0_0 = arith.constant 0 : index
    %c0_1 = arith.constant 0 : index
    %0 = vector.load %arg1[%c0, %c0_0, %c0_1] : memref<1x16x32xf32, #tpu.memory_space<vmem>>, vector<1x16x32xf32>
    %1 = vector.shape_cast %0 : vector<1x16x32xf32> to vector<16x32xf32>
    %c0_2 = arith.constant 0 : index
    %c0_3 = arith.constant 0 : index
    %2 = vector.load %arg2[%c0_2, %c0_3] : memref<32x32xf32, #tpu.memory_space<vmem>>, vector<32x32xf32>
    %cst = arith.constant dense<0.000000e+00> : vector<16x32xf32>
    %3 = tpu.matmul %1, %2, %cst {dimension_numbers = #tpu.dot_dimension_numbers<[1], [0], [0], [1], [0, 0, 1, 1], [], []>} : vector<16x32xf32>, vector<32x32xf32>, vector<16x32xf32> -> vector<16x32xf32>
    %c0_4 = arith.constant 0 : index
    %c0_5 = arith.constant 0 : index
    %4 = vector.load %arg3[%c0_4, %c0_5] : memref<1x32xf32, #tpu.memory_space<vmem>>, vector<1x32xf32>
    %5 = vector.broadcast %4 : vector<1x32xf32> to vector<16x32xf32>
    %6 = arith.addf %3, %5 : vector<16x32xf32>
    %cst_6 = arith.constant 0.000000e+00 : f32
    %7 = vector.broadcast %cst_6 : f32 to vector<16x32xf32>
    %8 = arith.cmpf ogt, %6, %7 : vector<16x32xf32>
    %cst_7 = arith.constant 0.00999999977 : f32
    %9 = vector.broadcast %cst_7 : f32 to vector<16x32xf32>
    %10 = arith.mulf %9, %6 : vector<16x32xf32>
    %11 = arith.select %8, %6, %10 : vector<16x32xi1>, vector<16x32xf32>
    %12 = vector.shape_cast %11 : vector<16x32xf32> to vector<2x8x32xf32>
    %c0_8 = arith.constant 0 : index
    %c0_9 = arith.constant 0 : index
    %13 = vector.load %arg4[%c0_8, %c0_9] : memref<8x32xf32, #tpu.memory_space<vmem>>, vector<8x32xf32>
    %14 = vector.shape_cast %13 : vector<8x32xf32> to vector<1x8x32xf32>
    %15 = vector.broadcast %14 : vector<1x8x32xf32> to vector<2x8x32xf32>
    %16 = arith.mulf %12, %15 : vector<2x8x32xf32>
    %cst_10 = arith.constant dense<0.000000e+00> : vector<2x32xf32>
    %17 = vector.multi_reduction <add>, %16, %cst_10 [1] : vector<2x8x32xf32> to vector<2x32xf32>
    %c0_11 = arith.constant 0 : index
    %c0_12 = arith.constant 0 : index
    %18 = vector.load %arg5[%c0_11, %c0_12] : memref<32x128xf32, #tpu.memory_space<vmem>>, vector<32x128xf32>
    %cst_13 = arith.constant dense<0.000000e+00> : vector<2x128xf32>
    %19 = tpu.matmul %17, %18, %cst_13 {dimension_numbers = #tpu.dot_dimension_numbers<[1], [0], [0], [1], [0, 0, 1, 1], [], []>} : vector<2x32xf32>, vector<32x128xf32>, vector<2x128xf32> -> vector<2x128xf32>
    %c0_14 = arith.constant 0 : index
    %c0_15 = arith.constant 0 : index
    %20 = vector.load %arg6[%c0_14, %c0_15] : memref<1x128xf32, #tpu.memory_space<vmem>>, vector<1x128xf32>
    %21 = vector.broadcast %20 : vector<1x128xf32> to vector<2x128xf32>
    %22 = arith.addf %19, %21 : vector<2x128xf32>
    %cst_16 = arith.constant 0.000000e+00 : f32
    %23 = vector.broadcast %cst_16 : f32 to vector<2x128xf32>
    %24 = arith.cmpf ogt, %22, %23 : vector<2x128xf32>
    %cst_17 = arith.constant 0.00999999977 : f32
    %25 = vector.broadcast %cst_17 : f32 to vector<2x128xf32>
    %26 = arith.mulf %25, %22 : vector<2x128xf32>
    %27 = arith.select %24, %22, %26 : vector<2x128xi1>, vector<2x128xf32>
    %c0_18 = arith.constant 0 : index
    %c0_19 = arith.constant 0 : index
    %c0_20 = arith.constant 0 : index
    %28 = vector.load %arg7[%c0_18, %c0_19, %c0_20] : memref<1x2x128xf32, #tpu.memory_space<vmem>>, vector<1x2x128xf32>
    %29 = vector.shape_cast %28 : vector<1x2x128xf32> to vector<2x128xf32>
    %30 = vector.shape_cast %27 : vector<2x128xf32> to vector<1x2x128xf32>
    tpu.vector_store %arg7[%c0_18, %c0_19, %c0_20], %30 {strides = array<i32>} : memref<1x2x128xf32, #tpu.memory_space<vmem>>, vector<1x2x128xf32>,
    return
  }
  func.func @transform_0(%arg0: i32) -> (i32, i32, i32) {
    %c0_i32 = arith.constant 0 : i32
    %c0_i32_0 = arith.constant 0 : i32
    %c0_i32_1 = arith.constant 0 : i32
    return %arg0, %c0_i32, %c0_i32_0 : i32, i32, i32
  }
  func.func @transform_1(%arg0: i32) -> (i32, i32) {
    %c0_i32 = arith.constant 0 : i32
    %c0_i32_0 = arith.constant 0 : i32
    %c0_i32_1 = arith.constant 0 : i32
    return %c0_i32, %c0_i32_0 : i32, i32
  }
  func.func @transform_2(%arg0: i32) -> (i32, i32) {
    %c0_i32 = arith.constant 0 : i32
    %c0_i32_0 = arith.constant 0 : i32
    %c0_i32_1 = arith.constant 0 : i32
    return %c0_i32, %c0_i32_0 : i32, i32
  }
  func.func @transform_3(%arg0: i32) -> (i32, i32) {
    %c0_i32 = arith.constant 0 : i32
    %c0_i32_0 = arith.constant 0 : i32
    %c0_i32_1 = arith.constant 0 : i32
    return %c0_i32, %c0_i32_0 : i32, i32
  }
  func.func @transform_4(%arg0: i32) -> (i32, i32) {
    %c0_i32 = arith.constant 0 : i32
    %c0_i32_0 = arith.constant 0 : i32
    %c0_i32_1 = arith.constant 0 : i32
    return %c0_i32, %c0_i32_0 : i32, i32
  }
  func.func @transform_5(%arg0: i32) -> (i32, i32) {
    %c0_i32 = arith.constant 0 : i32
    %c0_i32_0 = arith.constant 0 : i32
    %c0_i32_1 = arith.constant 0 : i32
    return %c0_i32, %c0_i32_0 : i32, i32
  }
  func.func @transform_6(%arg0: i32) -> (i32, i32, i32) {
    %c0_i32 = arith.constant 0 : i32
    %c0_i32_0 = arith.constant 0 : i32
    %c0_i32_1 = arith.constant 0 : i32
    return %arg0, %c0_i32, %c0_i32_0 : i32, i32, i32
  }
}

</mosaic_0001>

<llo_original>
// kernel: tpu_custom_call.1
$region0: #{tpu_custom_call.1}
  #allocation0 [shape = 'u32[]', space=smem, size = 0x4, offset = 0x4, fixed_abs, tag = 'smem constant byte address 0x4 - core index']
  #allocation1 [shape = 'u32[144,128]{1,0:T(1,128)}', space=vmem, size = 0x12000, scoped, tag = 'internal scratch']
  %s0 = inlined_call_operand.hbm [shape: f32[1,16,32], index: 0, kind: input, shape index: {}]
  %s1 = inlined_call_operand.hbm [shape: f32[32,32], index: 1, kind: input, shape index: {}]
  %s2 = inlined_call_operand.vmem [shape: f32[1,32], index: 2, kind: input, shape index: {}]
  %s3 = inlined_call_operand.vmem [shape: f32[8,32], index: 3, kind: input, shape index: {}]
  %s4 = inlined_call_operand.hbm [shape: f32[32,128], index: 4, kind: input, shape index: {}]
  %s5 = inlined_call_operand.vmem [shape: f32[1,128], index: 5, kind: input, shape index: {}]
  %s6 = inlined_call_operand.hbm [shape: f32[1,2,128], index: 6, kind: output, shape index: {}]
  %s7 = sld [smem:[#allocation0]]
  $region46: #{tpu_custom_call.1} parent=0
    _
  %s9 = ssub.s32 1, %s7
  %s10 = scalar_select 0, %s9, %s7
  $region1: #{tpu_custom_call.1} parent=0
    #allocation2 [shape = 'u8[8192]{0}', space=vmem, size = 0x2000, scoped, tag = 'input window, operand 0, single buffered']
    #allocation3 [shape = 's32[1]{0}', space=sflag, size = 0x4, scoped, tag = 'scoped memory for tpu_custom_call.1']
    #allocation4 [shape = 's32[1]{0}', space=sflag, size = 0x4, scoped, tag = 'scoped memory for tpu_custom_call.1']
    #allocation5 [shape = 'u8[16384]{0}', space=vmem, size = 0x4000, scoped, tag = 'input window, operand 1, single buffered']
    #allocation6 [shape = 's32[1]{0}', space=sflag, size = 0x4, scoped, tag = 'scoped memory for tpu_custom_call.1']
    #allocation7 [shape = 'u8[16384]{0}', space=vmem, size = 0x4000, scoped, tag = 'input window, operand 4, single buffered']
    #allocation8 [shape = 'u8[1024]{0}', space=vmem, size = 0x400, scoped, tag = 'output window, operand 0, single buffered']
    %11 = vsyncpa [#allocation3], 0
    %12 = vsyncpa [#allocation6], 0
    %13 = vsyncpa [#allocation4], 0
    // Predicated region
    $region2: #{tpu_custom_call.1} parent=1 // pred_check
      _
    $region3: #{tpu_custom_call.1} parent=1 // pred_check_branch
      %15 = sbr.rel (0) target = $region5
    $region4: #{tpu_custom_call.1} parent=1 // pred_region
      %s17 = ssub.s32 256, 256
      %18 = vsyncadd [#allocation3], %s17
      %s19 = sshll.u32 [#allocation2], 4
      %s20 = int_to_ptr.vmem [resolvable:$true] %s19
      %25 = dma.hbm_to_vmem [thread:$0]  %s0, 256, %s20, [#allocation3], 128, 128, 8
    $region5: #{tpu_custom_call.1} parent=1 // pred_fallthru
      _
    // Predicated region
    $region6: #{tpu_custom_call.1} parent=1 // pred_check
      _
    $region7: #{tpu_custom_call.1} parent=1 // pred_check_branch
      %27 = sbr.rel (0) target = $region9
    $region8: #{tpu_custom_call.1} parent=1 // pred_region
      %s29 = ssub.s32 512, 512
      %30 = vsyncadd [#allocation6], %s29
      %s31 = sshll.u32 [#allocation5], 4
      %s32 = int_to_ptr.vmem [resolvable:$true] %s31
      %37 = dma.hbm_to_vmem [thread:$0]  %s1, 512, %s32, [#allocation6], 128, 128, 8
    $region9: #{tpu_custom_call.1} parent=1 // pred_fallthru
      _
    // Predicated region
    $region10: #{tpu_custom_call.1} parent=1 // pred_check
      _
    $region11: #{tpu_custom_call.1} parent=1 // pred_check_branch
      %39 = sbr.rel (0) target = $region13
    $region12: #{tpu_custom_call.1} parent=1 // pred_region
      _
    $region13: #{tpu_custom_call.1} parent=1 // pred_fallthru
      _
    // Predicated region
    $region14: #{tpu_custom_call.1} parent=1 // pred_check
      _
    $region15: #{tpu_custom_call.1} parent=1 // pred_check_branch
      %41 = sbr.rel (0) target = $region17
    $region16: #{tpu_custom_call.1} parent=1 // pred_region
      _
    $region17: #{tpu_custom_call.1} parent=1 // pred_fallthru
      _
    // Predicated region
    $region18: #{tpu_custom_call.1} parent=1 // pred_check
      _
    $region19: #{tpu_custom_call.1} parent=1 // pred_check_branch
      %43 = sbr.rel (0) target = $region21
    $region20: #{tpu_custom_call.1} parent=1 // pred_region
      %s45 = ssub.s32 512, 512
      %46 = vsyncadd [#allocation6], %s45
      %s47 = sshll.u32 [#allocation7], 4
      %s48 = int_to_ptr.vmem [resolvable:$true] %s47
      %53 = dma.hbm_to_vmem [thread:$0]  %s4, 512, %s48, [#allocation6], 128, 128, 8
    $region21: #{tpu_custom_call.1} parent=1 // pred_fallthru
      _
    // Predicated region
    $region22: #{tpu_custom_call.1} parent=1 // pred_check
      _
    $region23: #{tpu_custom_call.1} parent=1 // pred_check_branch
      %55 = sbr.rel (0) target = $region25
    $region24: #{tpu_custom_call.1} parent=1 // pred_region
      _
    $region25: #{tpu_custom_call.1} parent=1 // pred_fallthru
      _
    // Predicated region
    $region26: #{tpu_custom_call.1} parent=1 // pred_check
      _
    $region27: #{tpu_custom_call.1} parent=1 // pred_check_branch
      %57 = sbr.rel (0) target = $region29
    $region28: #{tpu_custom_call.1} parent=1 // pred_region
      %58 = dma.done [#allocation3], 256
    $region29: #{tpu_custom_call.1} parent=1 // pred_fallthru
      _
    // Predicated region
    $region30: #{tpu_custom_call.1} parent=1 // pred_check
      _
    $region31: #{tpu_custom_call.1} parent=1 // pred_check_branch
      %60 = sbr.rel (0) target = $region33
    $region32: #{tpu_custom_call.1} parent=1 // pred_region
      %61 = dma.done [#allocation6], 512
    $region33: #{tpu_custom_call.1} parent=1 // pred_fallthru
      _
    // Predicated region
    $region34: #{tpu_custom_call.1} parent=1 // pred_check
      _
    $region35: #{tpu_custom_call.1} parent=1 // pred_check_branch
      %63 = sbr.rel (0) target = $region37
    $region36: #{tpu_custom_call.1} parent=1 // pred_region
      %64 = dma.done [#allocation6], 512
    $region37: #{tpu_custom_call.1} parent=1 // pred_fallthru
      _
    %v65 = vld [vmem:[#allocation2] sm:$0xff]
    %v66 = vld [vmem:[#allocation2 + $0x8] sm:$0xff]
    %v67 = vld [vmem:[#allocation5] sm:$0xff]
    %v68 = vld [vmem:[#allocation5 + $0x8] sm:$0xff]
    %v69 = vld [vmem:[#allocation5 + $0x10] sm:$0xff]
    %v70 = vld [vmem:[#allocation5 + $0x18] sm:$0xff]
    %v71 = vld [vmem:[%s2] sm:$0x1]
    %v73 = vlaneseq
    %v74 = vshrl.u32 %v73, 7
    %v75 = vsub.s32 0, %v74
    %v76 = vrot.slane %v71, %v75
    %vm78 = vcmask 261120
    %v80 = vsel %vm78, %v65, 0
    %v83 = vsel %vm78, %v66, 0
    %85 = vmatprep.subr.mxu0 0.0
    %86 = vmatpush1.msra.mxu0 %v67
    %87 = vmatprep.subr.mxu0 0.0
    %88 = vmatpush1.msra.mxu0 %v68
    %89 = vmatprep.subr.mxu0 0.0
    %90 = vmatpush1.msra.mxu0 %v69
    %91 = vmatprep.subr.mxu0 0.0
    %92 = vmatpush1.msra.mxu0 %v70
    %93 = vmatprep.subr.mxu0 0.0
    %94 = vmatpush1.msra.mxu0 0.0
    %95 = vmatprep.subr.mxu0 0.0
    %96 = vmatpush1.msra.mxu0 0.0
    %97 = vmatprep.subr.mxu0 0.0
    %98 = vmatpush1.msra.mxu0 0.0
    %99 = vmatprep.subr.mxu0 0.0
    %100 = vmatpush1.msra.mxu0 0.0
    %101 = vmatprep.subr.mxu0 0.0
    %102 = vmatpush1.msra.mxu0 0.0
    %103 = vmatprep.subr.mxu0 0.0
    %104 = vmatpush1.msra.mxu0 0.0
    %105 = vmatprep.subr.mxu0 0.0
    %106 = vmatpush1.msra.mxu0 0.0
    %107 = vmatprep.subr.mxu0 0.0
    %108 = vmatpush1.msra.mxu0 0.0
    %109 = vmatprep.subr.mxu0 0.0
    %110 = vmatpush1.msra.mxu0 0.0
    %111 = vmatprep.subr.mxu0 0.0
    %112 = vmatpush1.msra.mxu0 0.0
    %113 = vmatprep.subr.mxu0 0.0
    %114 = vmatpush1.msra.mxu0 0.0
    %115 = vmatprep.subr.mxu0 0.0
    %116 = vmatpush1.msra.mxu0 0.0
    %117 = vmatprep.subr.mxu0 0.0
    %118 = vmatpush1.msra.mxu0 0.0
    %119 = vmatprep.subr.mxu0 0.0
    %120 = vmatpush1.msra.mxu0 0.0
    %121 = vmatprep.subr.mxu0 0.0
    %122 = vmatpush1.msra.mxu0 0.0
    %123 = vmatprep.subr.mxu0 0.0
    %124 = vmatpush1.msra.mxu0 0.0
    %125 = vmatprep.subr.mxu0 0.0
    %126 = vmatpush1.msra.mxu0 0.0
    %127 = vmatprep.subr.mxu0 0.0
    %128 = vmatpush1.msra.mxu0 0.0
    %129 = vmatprep.subr.mxu0 0.0
    %130 = vmatpush1.msra.mxu0 0.0
    %131 = vmatprep.subr.mxu0 0.0
    %132 = vmatpush1.msra.mxu0 0.0
    %133 = vmatprep.subr.mxu0 0.0
    %134 = vmatpush1.msra.mxu0 0.0
    %135 = vmatprep.subr.mxu0 0.0
    %136 = vmatpush1.msra.mxu0 0.0
    %137 = vmatprep.subr.mxu0 0.0
    %138 = vmatpush1.msra.mxu0 0.0
    %139 = vmatprep.subr.mxu0 0.0
    %140 = vmatpush1.msra.mxu0 0.0
    %141 = vmatprep.subr.mxu0 0.0
    %142 = vmatpush1.msra.mxu0 0.0
    %143 = vmatprep.subr.mxu0 0.0
    %144 = vmatpush1.msra.mxu0 0.0
    %145 = vmatprep.subr.mxu0 0.0
    %146 = vmatpush1.msra.mxu0 0.0
    %147 = vmatprep.subr.mxu0 0.0
    %148 = vmatpush1.msra.mxu0 0.0
    %149 = vmatprep.mubr.f32.mxu0 0.0
    %150 = vmatmul.mubr.f32.gmra.mrb[0].mxu0 %v80
    %v151 = vpop.f32.mrb[0].mxu0
    %v152 = vadd.f32 %v76, %v151
    %v153 = vpop.f32.mrb[0].mxu0
    %154 = vmatprep.mubr.f32.mxu0 0.0
    %155 = vmatmul.mubr.f32.gmra.mrb[0].mxu0 %v83
    %v156 = vpop.f32.mrb[0].mxu0
    %v157 = vadd.f32 %v76, %v156
    %v158 = vpop.f32.mrb[0].mxu0
    %159 = vdwg.mxu0
    %vm160 = vcmp.gt.f32.partialorder %v152, 0.0
    %vm161 = vcmp.gt.f32.partialorder %v157, 0.0
    %v162 = vmul.f32 %v152, 0.01
    %v163 = vmul.f32 %v157, 0.01
    %v164 = vsel %vm160, %v152, %v162
    %v165 = vsel %vm161, %v157, %v163
    %v166 = vld [vmem:[%s3] sm:$0xff]
    %v167 = vmul.f32 %v164, %v166
    %v168 = vmul.f32 %v165, %v166
    %v169 = vsel %vm78, %v167, 0.0
    %v170 = vrot.slane %v169, 4
    %v171 = vadd.f32 %v169, %v170
    %v172 = vrot.slane %v171, 2
    %v173 = vadd.f32 %v171, %v172
    %v174 = vrot.slane %v173, 1
    %v175 = vadd.f32 %v173, %v174
    %v176 = vsel %vm78, %v168, 0.0
    %v177 = vrot.slane %v176, 4
    %v178 = vadd.f32 %v176, %v177
    %v179 = vrot.slane %v178, 2
    %v180 = vadd.f32 %v178, %v179
    %v181 = vrot.slane %v180, 1
    %v182 = vadd.f32 %v180, %v181
    %v183 = vld [vmem:[#allocation7] sm:$0xff]
    %v184 = vld [vmem:[#allocation7 + $0x8] sm:$0xff]
    %v185 = vld [vmem:[#allocation7 + $0x10] sm:$0xff]
    %v186 = vld [vmem:[#allocation7 + $0x18] sm:$0xff]
    %v187 = vld [vmem:[%s5] sm:$0x1]
    %v189 = vlaneseq
    %v190 = vshrl.u32 %v189, 7
    %v191 = vsub.s32 0, %v190
    %v192 = vrot.slane %v187, %v191
    %vm196 = vcmask 1041409
    %v197 = vsel %vm196, %v182, %v175
    %v198 = vsel %vm78, %v197, 0
    %200 = vmatprep.subr.mxu0 0.0
    %201 = vmatpush1.msra.mxu0 %v183
    %202 = vmatprep.subr.mxu0 0.0
    %203 = vmatpush1.msra.mxu0 %v184
    %204 = vmatprep.subr.mxu0 0.0
    %205 = vmatpush1.msra.mxu0 %v185
    %206 = vmatprep.subr.mxu0 0.0
    %207 = vmatpush1.msra.mxu0 %v186
    %208 = vmatprep.subr.mxu0 0.0
    %209 = vmatpush1.msra.mxu0 0.0
    %210 = vmatprep.subr.mxu0 0.0
    %211 = vmatpush1.msra.mxu0 0.0
    %212 = vmatprep.subr.mxu0 0.0
    %213 = vmatpush1.msra.mxu0 0.0
    %214 = vmatprep.subr.mxu0 0.0
    %215 = vmatpush1.msra.mxu0 0.0
    %216 = vmatprep.subr.mxu0 0.0
    %217 = vmatpush1.msra.mxu0 0.0
    %218 = vmatprep.subr.mxu0 0.0
    %219 = vmatpush1.msra.mxu0 0.0
    %220 = vmatprep.subr.mxu0 0.0
    %221 = vmatpush1.msra.mxu0 0.0
    %222 = vmatprep.subr.mxu0 0.0
    %223 = vmatpush1.msra.mxu0 0.0
    %224 = vmatprep.subr.mxu0 0.0
    %225 = vmatpush1.msra.mxu0 0.0
    %226 = vmatprep.subr.mxu0 0.0
    %227 = vmatpush1.msra.mxu0 0.0
    %228 = vmatprep.subr.mxu0 0.0
    %229 = vmatpush1.msra.mxu0 0.0
    %230 = vmatprep.subr.mxu0 0.0
    %231 = vmatpush1.msra.mxu0 0.0
    %232 = vmatprep.subr.mxu0 0.0
    %233 = vmatpush1.msra.mxu0 0.0
    %234 = vmatprep.subr.mxu0 0.0
    %235 = vmatpush1.msra.mxu0 0.0
    %236 = vmatprep.subr.mxu0 0.0
    %237 = vmatpush1.msra.mxu0 0.0
    %238 = vmatprep.subr.mxu0 0.0
    %239 = vmatpush1.msra.mxu0 0.0
    %240 = vmatprep.subr.mxu0 0.0
    %241 = vmatpush1.msra.mxu0 0.0
    %242 = vmatprep.subr.mxu0 0.0
    %243 = vmatpush1.msra.mxu0 0.0
    %244 = vmatprep.subr.mxu0 0.0
    %245 = vmatpush1.msra.mxu0 0.0
    %246 = vmatprep.subr.mxu0 0.0
    %247 = vmatpush1.msra.mxu0 0.0
    %248 = vmatprep.subr.mxu0 0.0
    %249 = vmatpush1.msra.mxu0 0.0
    %250 = vmatprep.subr.mxu0 0.0
    %251 = vmatpush1.msra.mxu0 0.0
    %252 = vmatprep.subr.mxu0 0.0
    %253 = vmatpush1.msra.mxu0 0.0
    %254 = vmatprep.subr.mxu0 0.0
    %255 = vmatpush1.msra.mxu0 0.0
    %256 = vmatprep.subr.mxu0 0.0
    %257 = vmatpush1.msra.mxu0 0.0
    %258 = vmatprep.subr.mxu0 0.0
    %259 = vmatpush1.msra.mxu0 0.0
    %260 = vmatprep.subr.mxu0 0.0
    %261 = vmatpush1.msra.mxu0 0.0
    %262 = vmatprep.subr.mxu0 0.0
    %263 = vmatpush1.msra.mxu0 0.0
    %264 = vmatprep.mubr.f32.mxu0 0.0
    %265 = vmatmul.mubr.f32.gmra.mrb[0].mxu0 %v198
    %v266 = vpop.f32.mrb[0].mxu0
    %v267 = vadd.f32 %v192, %v266
    %v268 = vpop.f32.mrb[0].mxu0
    %269 = vdwg.mxu0
    %vm270 = vcmp.gt.f32.partialorder %v267, 0.0
    %v271 = vmul.f32 %v267, 0.01
    %v272 = vsel %vm270, %v267, %v271
    %273 = vst [vmem:[#allocation8] sm:$0x3] %v272
    // Predicated region
    $region38: #{tpu_custom_call.1} parent=1 // pred_check
      _
    $region39: #{tpu_custom_call.1} parent=1 // pred_check_branch
      %275 = sbr.rel (0) target = $region41
    $region40: #{tpu_custom_call.1} parent=1 // pred_region
      %s277 = ssub.s32 32, 32
      %278 = vsyncadd [#allocation4], %s277
      %s280 = sshll.u32 [#allocation8], 4
      %s281 = int_to_ptr.vmem [resolvable:$true] %s280
      %283 = dma.vmem_to_hbm [thread:$0]  %s281, 32, %s6, [#allocation4]
    $region41: #{tpu_custom_call.1} parent=1 // pred_fallthru
      _
    // Predicated region
    $region42: #{tpu_custom_call.1} parent=1 // pred_check
      _
    $region43: #{tpu_custom_call.1} parent=1 // pred_check_branch
      %285 = sbr.rel (0) target = $region45
    $region44: #{tpu_custom_call.1} parent=1 // pred_region
      %286 = dma.done [#allocation4], 32
    $region45: #{tpu_custom_call.1} parent=1 // pred_fallthru
      _
    %287 = vsyncpa [#allocation3], 1
    %288 = vsyncpa [#allocation6], 1
    %289 = vsyncpa [#allocation4], 1

</llo_original>
